<compile_context>
chip_gen: v5e
topology: v5e:2x2
jax: 0.10.0
libtpu: 0.0.40
codegen_flags: <defaults>
</compile_context>

<pallas_src>
import jax
import jax.numpy as jnp
from jax import lax
from jax.experimental import pallas as pl
from jax.experimental.pallas import tpu as pltpu

_NEG = -1e30  # large-negative logit for padded classes (avoid -inf -> NaN)


def _round_up(v, m):
    return ((v + m - 1) // m) * m


def _make_vat_kernel(*, batch, batch_tile, xi, eps, ip):
    """Build the fused VAT-loss kernel body (static constants baked in)."""

    def _softmax_stats(z):
        m = jnp.max(z, axis=-1, keepdims=True)
        e = jnp.exp(z - m)
        s = jnp.sum(e, axis=-1, keepdims=True)
        p = e * pl.reciprocal(s, approx=True)        # EUP divide
        logp = (z - m) - jnp.log(s)
        return p, logp

    def kernel(x_ref, d0_ref, wt_ref, w_ref, b_ref, mg_ref, mgt_ref,
               kl_ref, ent_ref):
        i = pl.program_id(0)

        x = x_ref[...]                                # [Bt, F]  f32
        wt = wt_ref[...]                              # [F, Cp]  bf16 (resident)
        w = w_ref[...]                                # [Cp, F]  bf16 (resident)
        bias = b_ref[...]                             # [1, Cp]  f32 (NEG on pad)
        mg = mg_ref[...]                              # [F, Gp]  f32 membership
        mgt = mgt_ref[...]                            # [Gp, F]  f32

        bt = x.shape[0]
        row = i * batch_tile + lax.broadcasted_iota(jnp.int32, (bt, 1), 0)
        rmask = (row < batch).astype(jnp.float32)     # mask padded batch rows

        def classify(v):                              # [Bt,F] -> logits [Bt,Cp]
            return jnp.dot(v.astype(jnp.bfloat16), wt,
                           preferred_element_type=jnp.float32) + bias

        def l2norm_groups(v):                         # L2-normalize over point axis
            sq = v * v
            gs = jnp.dot(sq, mg, preferred_element_type=jnp.float32)    # [Bt,Gp]
            nrm = jnp.sqrt(gs)
            nf = jnp.dot(nrm, mgt, preferred_element_type=jnp.float32)  # [Bt,F]
            return v * pl.reciprocal(nf + 1e-8, approx=True)

        # pred = softmax(model(x))  (detached target)
        pred, _ = _softmax_stats(classify(x))
        log_pred = jnp.where(pred > 0, jnp.log(pred), 0.0)   # xlogy-style guard

        # entropy partial sum (consumed only when EntMin)
        ent_rows = -jnp.sum(pred * log_pred, axis=-1, keepdims=True)
        ent_ref[0, 0] = jnp.sum(ent_rows * rmask)

        # initial perturbation: (randn - 0.5), group L2-normalized
        d = l2norm_groups(d0_ref[...])

        # power iteration(s): analytic grad of batch-mean KL(pred || softmax(zhat))
        # through the linear classifier; xi and 1/B folded into the residual.
        scale = xi / float(batch)
        for _ in range(ip):
            phat, _ = _softmax_stats(classify(x + xi * d))
            g = (phat - pred) * scale                            # [Bt, Cp]
            gx = jnp.dot(g.astype(jnp.bfloat16), w,
                         preferred_element_type=jnp.float32)     # dKL/dd  [Bt, F]
            d = l2norm_groups(gx)

        # LDS = KL(pred || softmax(model(x + eps*d)))   (batchmean /B on host)
        _, logp_adv = _softmax_stats(classify(x + eps * d))
        kl_rows = jnp.sum(pred * (log_pred - logp_adv), axis=-1, keepdims=True)
        kl_ref[0, 0] = jnp.sum(kl_rows * rmask)

    return kernel


def vat_loss(x, w, b, key, xi=0.01, eps=0.1, ip=1, ent_min=False):
    B, T, N, C3 = x.shape
    assert C3 == 3
    F = T * N * C3
    C = w.shape[0]

    Cp = _round_up(C, 128)                 # lane-dense class dim
    G = T * C3                             # number of L2-norm groups per row
    Gp = _round_up(G, 128)
    Bt = min(128, _round_up(B, 8))         # batch tile (sublane multiple)
    Bp = _round_up(B, Bt)
    n_tiles = Bp // Bt

    # --- one-time host-side packing (W^T hoisted, everything padded once) ---
    x_flat = x.reshape(B, F).astype(jnp.float32)
    x_pad = jnp.zeros((Bp, F), jnp.float32).at[:B].set(x_flat)

    # torch.randn(x.shape).sub(0.5)
    d0 = jax.random.normal(key, (B, T, N, C3), dtype=jnp.float32) - 0.5
    d0_pad = jnp.zeros((Bp, F), jnp.float32).at[:B].set(d0.reshape(B, F))

    wt_pad = jnp.zeros((F, Cp), jnp.bfloat16).at[:, :C].set(w.T.astype(jnp.bfloat16))
    w_pad = jnp.zeros((Cp, F), jnp.bfloat16).at[:C, :].set(w.astype(jnp.bfloat16))
    b_pad = jnp.full((1, Cp), _NEG, jnp.float32).at[0, :C].set(b.astype(jnp.float32))

    # group-membership matrices: feature f = (t, n, coord) -> group g = (t, coord).
    # Used to compute / broadcast the per-group L2 norm with two MXU matmuls.
    f_idx = jnp.arange(F)
    g_of_f = (f_idx // (N * C3)) * C3 + (f_idx % C3)
    mg = (g_of_f[:, None] == jnp.arange(Gp)[None, :]).astype(jnp.float32)  # [F, Gp]
    mgt = mg.T                                                             # [Gp, F]

    kernel = _make_vat_kernel(batch=B, batch_tile=Bt, xi=float(xi),
                              eps=float(eps), ip=int(ip))

    def _resident(i):
        return (0, 0)

    in_specs = [
        pl.BlockSpec((Bt, F), lambda i: (i, 0)),        # x
        pl.BlockSpec((Bt, F), lambda i: (i, 0)),        # d0
        pl.BlockSpec((F, Cp), _resident),               # W^T  (VMEM-resident)
        pl.BlockSpec((Cp, F), _resident),               # W    (VMEM-resident)
        pl.BlockSpec((1, Cp), _resident),               # bias
        pl.BlockSpec((F, Gp), _resident),               # group membership
        pl.BlockSpec((Gp, F), _resident),               # group membership^T
    ]
    smem_out = pl.BlockSpec((1, 1), lambda i: (i, 0),
                            memory_space=pltpu.MemorySpace.SMEM)
    out_specs = (smem_out, smem_out)
    out_shape = (jax.ShapeDtypeStruct((n_tiles, 1), jnp.float32),   # KL partials
                 jax.ShapeDtypeStruct((n_tiles, 1), jnp.float32))   # entropy partials

    # advisory VMEM / scheduling hints
    block_bytes = (2 * Bt * F * 4 + 2 * F * Cp * 2 + Cp * 4 + 2 * F * Gp * 4)
    vmem_limit = int(min(max(2 * block_bytes + (4 << 20), 16 << 20), 64 << 20))
    flops = 2 * Bp * F * Cp * (2 + 2 * ip) + 4 * Bp * F * Gp * (1 + ip)
    transcendentals = (3 + ip) * 3 * Bp * Cp + (1 + ip) * Bp * Gp
    bytes_accessed = (2 * Bp * F * 4 + 2 * F * Cp * 2 + Cp * 4
                      + 2 * F * Gp * 4 + 2 * n_tiles * 4)

    kl_parts, ent_parts = pl.pallas_call(
        kernel,
        out_shape=out_shape,
        grid=(n_tiles,),
        in_specs=in_specs,
        out_specs=out_specs,
        compiler_params=pltpu.CompilerParams(
            dimension_semantics=("parallel",),
            vmem_limit_bytes=vmem_limit),
        cost_estimate=pl.CostEstimate(flops=int(flops),
                                      transcendentals=int(transcendentals),
                                      bytes_accessed=int(bytes_accessed)),
    )(x_pad, d0_pad, wt_pad, w_pad, b_pad, mg, mgt)

    lds = jnp.sum(kl_parts) / B            # batchmean
    if ent_min:
        lds = lds + jnp.sum(ent_parts) / B
    return lds


if __name__ == "__main__":
    key = jax.random.PRNGKey(0)
    kx, kw, kd = jax.random.split(key, 3)

    # small shapes consistent with the module: x[B, T, N, 3]
    B, T, N, C3 = 2, 4, 16, 3
    num_classes = 8
    feat = T * N * C3

    x = jax.random.normal(kx, (B, T, N, C3), dtype=jnp.float32)
    W = 0.05 * jax.random.normal(kw, (num_classes, feat), dtype=jnp.float32)
    bias = jnp.zeros((num_classes,), dtype=jnp.float32)

    lds = vat_loss(x, W, bias, kd, xi=0.01, eps=0.1, ip=1, ent_min=False)
    lds_entmin = vat_loss(x, W, bias, kd, xi=0.01, eps=0.1, ip=1, ent_min=True)

    jax.block_until_ready(lds)
    jax.block_until_ready(lds_entmin)
    print("KERNEL_OK")
</pallas_src>

<mosaic_0001>
module attributes {stable_mosaic.version = 11 : i64} {
  func.func @kernel(%arg0: i32, %arg1: memref<8x192xf32, #tpu.memory_space<vmem>>, %arg2: memref<8x192xf32, #tpu.memory_space<vmem>>, %arg3: memref<192x128xbf16, #tpu.memory_space<vmem>>, %arg4: memref<128x192xbf16, #tpu.memory_space<vmem>>, %arg5: memref<1x128xf32, #tpu.memory_space<vmem>>, %arg6: memref<192x128xf32, #tpu.memory_space<vmem>>, %arg7: memref<128x192xf32, #tpu.memory_space<vmem>>, %arg8: memref<1x1xf32, #tpu.memory_space<smem>>, %arg9: memref<1x1xf32, #tpu.memory_space<smem>>) attributes {dimension_semantics = [#tpu.dimension_semantics<parallel>], iteration_bounds = array<i64: 1>, scalar_prefetch = 0 : i64, scratch_operands = 0 : i64, tpu.core_type = #tpu.core_type<tc>, window_params = [{transform_indices = @transform_0, window_bounds = array<i64: 8, 192>}, {transform_indices = @transform_1, window_bounds = array<i64: 8, 192>}, {pipeline_mode = #tpu.pipeline_mode<synchronous>, transform_indices = @transform_2, window_bounds = array<i64: 192, 128>}, {pipeline_mode = #tpu.pipeline_mode<synchronous>, transform_indices = @transform_3, window_bounds = array<i64: 128, 192>}, {pipeline_mode = #tpu.pipeline_mode<synchronous>, transform_indices = @transform_4, window_bounds = array<i64: 1, 128>}, {pipeline_mode = #tpu.pipeline_mode<synchronous>, transform_indices = @transform_5, window_bounds = array<i64: 192, 128>}, {pipeline_mode = #tpu.pipeline_mode<synchronous>, transform_indices = @transform_6, window_bounds = array<i64: 128, 192>}, {transform_indices = @transform_7, window_bounds = array<i64: 1, 1>}, {transform_indices = @transform_8, window_bounds = array<i64: 1, 1>}]} {
    %c0 = arith.constant 0 : index
    %c0_0 = arith.constant 0 : index
    %0 = vector.load %arg1[%c0, %c0_0] : memref<8x192xf32, #tpu.memory_space<vmem>>, vector<8x192xf32>
    %c0_1 = arith.constant 0 : index
    %c0_2 = arith.constant 0 : index
    %1 = vector.load %arg3[%c0_1, %c0_2] : memref<192x128xbf16, #tpu.memory_space<vmem>>, vector<192x128xbf16>
    %c0_3 = arith.constant 0 : index
    %c0_4 = arith.constant 0 : index
    %2 = vector.load %arg4[%c0_3, %c0_4] : memref<128x192xbf16, #tpu.memory_space<vmem>>, vector<128x192xbf16>
    %c0_5 = arith.constant 0 : index
    %c0_6 = arith.constant 0 : index
    %3 = vector.load %arg5[%c0_5, %c0_6] : memref<1x128xf32, #tpu.memory_space<vmem>>, vector<1x128xf32>
    %c0_7 = arith.constant 0 : index
    %c0_8 = arith.constant 0 : index
    %4 = vector.load %arg6[%c0_7, %c0_8] : memref<192x128xf32, #tpu.memory_space<vmem>>, vector<192x128xf32>
    %c0_9 = arith.constant 0 : index
    %c0_10 = arith.constant 0 : index
    %5 = vector.load %arg7[%c0_9, %c0_10] : memref<128x192xf32, #tpu.memory_space<vmem>>, vector<128x192xf32>
    %c8_i32 = arith.constant 8 : i32
    %6 = arith.muli %arg0, %c8_i32 : i32
    %7 = tpu.iota {dimensions = array<i32: 0>} : vector<8x1xi32>
    %8 = vector.broadcast %6 : i32 to vector<8x1xi32>
    %9 = arith.addi %8, %7 : vector<8x1xi32>
    %c2_i32 = arith.constant 2 : i32
    %10 = vector.broadcast %c2_i32 : i32 to vector<8x1xi32>
    %11 = arith.cmpi slt, %9, %10 : vector<8x1xi32>
    %12 = arith.extui %11 : vector<8x1xi1> to vector<8x1xi32>
    %13 = arith.sitofp %12 : vector<8x1xi32> to vector<8x1xf32>
    %14 = arith.truncf %0 : vector<8x192xf32> to vector<8x192xbf16>
    %cst = arith.constant dense<0.000000e+00> : vector<8x128xf32>
    %15 = tpu.matmul %14, %1, %cst {dimension_numbers = #tpu.dot_dimension_numbers<[1], [0], [0], [1], [0, 0, 1, 1], [], []>} : vector<8x192xbf16>, vector<192x128xbf16>, vector<8x128xf32> -> vector<8x128xf32>
    %16 = vector.broadcast %3 : vector<1x128xf32> to vector<8x128xf32>
    %17 = arith.addf %15, %16 : vector<8x128xf32>
    %cst_11 = arith.constant dense<0xFF800000> : vector<8xf32>
    %18 = vector.multi_reduction <maximumf>, %17, %cst_11 [1] : vector<8x128xf32> to vector<8xf32>
    %19 = vector.shape_cast %18 : vector<8xf32> to vector<8x1xf32>
    %20 = vector.broadcast %19 : vector<8x1xf32> to vector<8x128xf32>
    %21 = arith.subf %17, %20 : vector<8x128xf32>
    %22 = math.exp %21 : vector<8x128xf32>
    %cst_12 = arith.constant dense<0.000000e+00> : vector<8xf32>
    %23 = vector.multi_reduction <add>, %22, %cst_12 [1] : vector<8x128xf32> to vector<8xf32>
    %24 = vector.shape_cast %23 : vector<8xf32> to vector<8x1xf32>
    %25 = tpu.reciprocal %24 {approx = true} : vector<8x1xf32> -> vector<8x1xf32>
    %26 = vector.broadcast %25 : vector<8x1xf32> to vector<8x128xf32>
    %27 = arith.mulf %22, %26 : vector<8x128xf32>
    %cst_13 = arith.constant 0.000000e+00 : f32
    %28 = vector.broadcast %cst_13 : f32 to vector<8x128xf32>
    %29 = arith.cmpf ogt, %27, %28 : vector<8x128xf32>
    %30 = math.log %27 : vector<8x128xf32>
    %cst_14 = arith.constant 0.000000e+00 : f32
    %31 = vector.broadcast %cst_14 : f32 to vector<8x128xf32>
    %32 = arith.select %29, %30, %31 : vector<8x128xi1>, vector<8x128xf32>
    %33 = arith.mulf %27, %32 : vector<8x128xf32>
    %cst_15 = arith.constant dense<0.000000e+00> : vector<8xf32>
    %34 = vector.multi_reduction <add>, %33, %cst_15 [1] : vector<8x128xf32> to vector<8xf32>
    %35 = vector.shape_cast %34 : vector<8xf32> to vector<8x1xf32>
    %cst_16 = arith.constant 0.000000e+00 : f32
    %36 = vector.broadcast %cst_16 : f32 to vector<8x1xf32>
    %37 = arith.subf %36, %35 : vector<8x1xf32>
    %38 = arith.mulf %37, %13 : vector<8x1xf32>
    %39 = vector.shape_cast %38 : vector<8x1xf32> to vector<1x8x1xf32>
    %cst_17 = arith.constant dense<0.000000e+00> : vector<1xf32>
    %40 = vector.multi_reduction <add>, %39, %cst_17 [1, 2] : vector<1x8x1xf32> to vector<1xf32>
    %41 = vector.shape_cast %40 : vector<1xf32> to vector<1x1x1xf32>
    %42 = vector.extract %41[0, 0, 0] : f32 from vector<1x1x1xf32>
    %c0_18 = arith.constant 0 : index
    %c0_19 = arith.constant 0 : index
    %43 = memref.load %arg9[%c0_18, %c0_19] : memref<1x1xf32, #tpu.memory_space<smem>>
    memref.store %42, %arg9[%c0_18, %c0_19] : memref<1x1xf32, #tpu.memory_space<smem>>
    %c0_20 = arith.constant 0 : index
    %c0_21 = arith.constant 0 : index
    %44 = vector.load %arg2[%c0_20, %c0_21] : memref<8x192xf32, #tpu.memory_space<vmem>>, vector<8x192xf32>
    %45 = arith.mulf %44, %44 : vector<8x192xf32>
    %cst_22 = arith.constant dense<0.000000e+00> : vector<8x128xf32>
    %46 = tpu.matmul %45, %4, %cst_22 {dimension_numbers = #tpu.dot_dimension_numbers<[1], [0], [0], [1], [0, 0, 1, 1], [], []>} : vector<8x192xf32>, vector<192x128xf32>, vector<8x128xf32> -> vector<8x128xf32>
    %47 = math.sqrt %46 : vector<8x128xf32>
    %cst_23 = arith.constant dense<0.000000e+00> : vector<8x192xf32>
    %48 = tpu.matmul %47, %5, %cst_23 {dimension_numbers = #tpu.dot_dimension_numbers<[1], [0], [0], [1], [0, 0, 1, 1], [], []>} : vector<8x128xf32>, vector<128x192xf32>, vector<8x192xf32> -> vector<8x192xf32>
    %cst_24 = arith.constant 9.99999993E-9 : f32
    %49 = vector.broadcast %cst_24 : f32 to vector<8x192xf32>
    %50 = arith.addf %48, %49 : vector<8x192xf32>
    %51 = tpu.reciprocal %50 {approx = true} : vector<8x192xf32> -> vector<8x192xf32>
    %52 = arith.mulf %44, %51 : vector<8x192xf32>
    %cst_25 = arith.constant 0.00999999977 : f32
    %53 = vector.broadcast %cst_25 : f32 to vector<8x192xf32>
    %54 = arith.mulf %53, %52 : vector<8x192xf32>
    %55 = arith.addf %0, %54 : vector<8x192xf32>
    %56 = arith.truncf %55 : vector<8x192xf32> to vector<8x192xbf16>
    %cst_26 = arith.constant dense<0.000000e+00> : vector<8x128xf32>
    %57 = tpu.matmul %56, %1, %cst_26 {dimension_numbers = #tpu.dot_dimension_numbers<[1], [0], [0], [1], [0, 0, 1, 1], [], []>} : vector<8x192xbf16>, vector<192x128xbf16>, vector<8x128xf32> -> vector<8x128xf32>
    %58 = vector.broadcast %3 : vector<1x128xf32> to vector<8x128xf32>
    %59 = arith.addf %57, %58 : vector<8x128xf32>
    %cst_27 = arith.constant dense<0xFF800000> : vector<8xf32>
    %60 = vector.multi_reduction <maximumf>, %59, %cst_27 [1] : vector<8x128xf32> to vector<8xf32>
    %61 = vector.shape_cast %60 : vector<8xf32> to vector<8x1xf32>
    %62 = vector.broadcast %61 : vector<8x1xf32> to vector<8x128xf32>
    %63 = arith.subf %59, %62 : vector<8x128xf32>
    %64 = math.exp %63 : vector<8x128xf32>
    %cst_28 = arith.constant dense<0.000000e+00> : vector<8xf32>
    %65 = vector.multi_reduction <add>, %64, %cst_28 [1] : vector<8x128xf32> to vector<8xf32>
    %66 = vector.shape_cast %65 : vector<8xf32> to vector<8x1xf32>
    %67 = tpu.reciprocal %66 {approx = true} : vector<8x1xf32> -> vector<8x1xf32>
    %68 = vector.broadcast %67 : vector<8x1xf32> to vector<8x128xf32>
    %69 = arith.mulf %64, %68 : vector<8x128xf32>
    %70 = arith.subf %69, %27 : vector<8x128xf32>
    %cst_29 = arith.constant 5.000000e-03 : f32
    %71 = vector.broadcast %cst_29 : f32 to vector<8x128xf32>
    %72 = arith.mulf %70, %71 : vector<8x128xf32>
    %73 = arith.truncf %72 : vector<8x128xf32> to vector<8x128xbf16>
    %cst_30 = arith.constant dense<0.000000e+00> : vector<8x192xf32>
    %74 = tpu.matmul %73, %2, %cst_30 {dimension_numbers = #tpu.dot_dimension_numbers<[1], [0], [0], [1], [0, 0, 1, 1], [], []>} : vector<8x128xbf16>, vector<128x192xbf16>, vector<8x192xf32> -> vector<8x192xf32>
    %75 = arith.mulf %74, %74 : vector<8x192xf32>
    %cst_31 = arith.constant dense<0.000000e+00> : vector<8x128xf32>
    %76 = tpu.matmul %75, %4, %cst_31 {dimension_numbers = #tpu.dot_dimension_numbers<[1], [0], [0], [1], [0, 0, 1, 1], [], []>} : vector<8x192xf32>, vector<192x128xf32>, vector<8x128xf32> -> vector<8x128xf32>
    %77 = math.sqrt %76 : vector<8x128xf32>
    %cst_32 = arith.constant dense<0.000000e+00> : vector<8x192xf32>
    %78 = tpu.matmul %77, %5, %cst_32 {dimension_numbers = #tpu.dot_dimension_numbers<[1], [0], [0], [1], [0, 0, 1, 1], [], []>} : vector<8x128xf32>, vector<128x192xf32>, vector<8x192xf32> -> vector<8x192xf32>
    %cst_33 = arith.constant 9.99999993E-9 : f32
    %79 = vector.broadcast %cst_33 : f32 to vector<8x192xf32>
    %80 = arith.addf %78, %79 : vector<8x192xf32>
    %81 = tpu.reciprocal %80 {approx = true} : vector<8x192xf32> -> vector<8x192xf32>
    %82 = arith.mulf %74, %81 : vector<8x192xf32>
    %cst_34 = arith.constant 1.000000e-01 : f32
    %83 = vector.broadcast %cst_34 : f32 to vector<8x192xf32>
    %84 = arith.mulf %83, %82 : vector<8x192xf32>
    %85 = arith.addf %0, %84 : vector<8x192xf32>
    %86 = arith.truncf %85 : vector<8x192xf32> to vector<8x192xbf16>
    %cst_35 = arith.constant dense<0.000000e+00> : vector<8x128xf32>
    %87 = tpu.matmul %86, %1, %cst_35 {dimension_numbers = #tpu.dot_dimension_numbers<[1], [0], [0], [1], [0, 0, 1, 1], [], []>} : vector<8x192xbf16>, vector<192x128xbf16>, vector<8x128xf32> -> vector<8x128xf32>
    %88 = vector.broadcast %3 : vector<1x128xf32> to vector<8x128xf32>
    %89 = arith.addf %87, %88 : vector<8x128xf32>
    %cst_36 = arith.constant dense<0xFF800000> : vector<8xf32>
    %90 = vector.multi_reduction <maximumf>, %89, %cst_36 [1] : vector<8x128xf32> to vector<8xf32>
    %91 = vector.shape_cast %90 : vector<8xf32> to vector<8x1xf32>
    %92 = vector.broadcast %91 : vector<8x1xf32> to vector<8x128xf32>
    %93 = arith.subf %89, %92 : vector<8x128xf32>
    %94 = math.exp %93 : vector<8x128xf32>
    %cst_37 = arith.constant dense<0.000000e+00> : vector<8xf32>
    %95 = vector.multi_reduction <add>, %94, %cst_37 [1] : vector<8x128xf32> to vector<8xf32>
    %96 = vector.shape_cast %95 : vector<8xf32> to vector<8x1xf32>
    %97 = vector.broadcast %91 : vector<8x1xf32> to vector<8x128xf32>
    %98 = arith.subf %89, %97 : vector<8x128xf32>
    %99 = math.log %96 : vector<8x1xf32>
    %100 = vector.broadcast %99 : vector<8x1xf32> to vector<8x128xf32>
    %101 = arith.subf %98, %100 : vector<8x128xf32>
    %102 = arith.subf %32, %101 : vector<8x128xf32>
    %103 = arith.mulf %27, %102 : vector<8x128xf32>
    %cst_38 = arith.constant dense<0.000000e+00> : vector<8xf32>
    %104 = vector.multi_reduction <add>, %103, %cst_38 [1] : vector<8x128xf32> to vector<8xf32>
    %105 = vector.shape_cast %104 : vector<8xf32> to vector<8x1xf32>
    %106 = arith.mulf %105, %13 : vector<8x1xf32>
    %107 = vector.shape_cast %106 : vector<8x1xf32> to vector<1x8x1xf32>
    %cst_39 = arith.constant dense<0.000000e+00> : vector<1xf32>
    %108 = vector.multi_reduction <add>, %107, %cst_39 [1, 2] : vector<1x8x1xf32> to vector<1xf32>
    %109 = vector.shape_cast %108 : vector<1xf32> to vector<1x1x1xf32>
    %110 = vector.extract %109[0, 0, 0] : f32 from vector<1x1x1xf32>
    %c0_40 = arith.constant 0 : index
    %c0_41 = arith.constant 0 : index
    %111 = memref.load %arg8[%c0_40, %c0_41] : memref<1x1xf32, #tpu.memory_space<smem>>
    memref.store %110, %arg8[%c0_40, %c0_41] : memref<1x1xf32, #tpu.memory_space<smem>>
    return
  }
  func.func @transform_0(%arg0: i32) -> (i32, i32) {
    %c0_i32 = arith.constant 0 : i32
    %c0_i32_0 = arith.constant 0 : i32
    return %arg0, %c0_i32 : i32, i32
  }
  func.func @transform_1(%arg0: i32) -> (i32, i32) {
    %c0_i32 = arith.constant 0 : i32
    %c0_i32_0 = arith.constant 0 : i32
    return %arg0, %c0_i32 : i32, i32
  }
  func.func @transform_2(%arg0: i32) -> (i32, i32) {
    %c0_i32 = arith.constant 0 : i32
    %c0_i32_0 = arith.constant 0 : i32
    %c0_i32_1 = arith.constant 0 : i32
    return %c0_i32, %c0_i32_0 : i32, i32
  }
  func.func @transform_3(%arg0: i32) -> (i32, i32) {
    %c0_i32 = arith.constant 0 : i32
    %c0_i32_0 = arith.constant 0 : i32
    %c0_i32_1 = arith.constant 0 : i32
    return %c0_i32, %c0_i32_0 : i32, i32
  }
  func.func @transform_4(%arg0: i32) -> (i32, i32) {
    %c0_i32 = arith.constant 0 : i32
    %c0_i32_0 = arith.constant 0 : i32
    %c0_i32_1 = arith.constant 0 : i32
    return %c0_i32, %c0_i32_0 : i32, i32
  }
  func.func @transform_5(%arg0: i32) -> (i32, i32) {
    %c0_i32 = arith.constant 0 : i32
    %c0_i32_0 = arith.constant 0 : i32
    %c0_i32_1 = arith.constant 0 : i32
    return %c0_i32, %c0_i32_0 : i32, i32
  }
  func.func @transform_6(%arg0: i32) -> (i32, i32) {
    %c0_i32 = arith.constant 0 : i32
    %c0_i32_0 = arith.constant 0 : i32
    %c0_i32_1 = arith.constant 0 : i32
    return %c0_i32, %c0_i32_0 : i32, i32
  }
  func.func @transform_7(%arg0: i32) -> (i32, i32) {
    %c0_i32 = arith.constant 0 : i32
    %c0_i32_0 = arith.constant 0 : i32
    return %arg0, %c0_i32 : i32, i32
  }
  func.func @transform_8(%arg0: i32) -> (i32, i32) {
    %c0_i32 = arith.constant 0 : i32
    %c0_i32_0 = arith.constant 0 : i32
    return %arg0, %c0_i32 : i32, i32
  }
}

</mosaic_0001>

<llo_original>
// kernel: tpu_custom_call.1
$region0: #{tpu_custom_call.1}
  #allocation0 [shape = 'u32[]', space=smem, size = 0x4, offset = 0x4, fixed_abs, tag = 'smem constant byte address 0x4 - core index']
  #allocation1 [shape = 'u32[72,128]{1,0:T(1,128)}', space=vmem, size = 0x9000, scoped, tag = 'internal scratch']
  %s0 = inlined_call_operand.vmem [shape: f32[8,192], index: 0, kind: input, shape index: {}]
  %s1 = inlined_call_operand.vmem [shape: f32[8,192], index: 1, kind: input, shape index: {}]
  %s2 = inlined_call_operand.vmem [shape: bf16[192,128], index: 2, kind: input, shape index: {}]
  %s3 = inlined_call_operand.vmem [shape: bf16[128,192], index: 3, kind: input, shape index: {}]
  %s4 = inlined_call_operand.vmem [shape: f32[1,128], index: 4, kind: input, shape index: {}]
  %s5 = inlined_call_operand.vmem [shape: f32[192,128], index: 5, kind: input, shape index: {}]
  %s6 = inlined_call_operand.vmem [shape: f32[128,192], index: 6, kind: input, shape index: {}]
  %s7 = inlined_call_operand.hbm [shape: f32[1,1], index: 7, kind: output, shape index: {0}]
  %s8 = inlined_call_operand.hbm [shape: f32[1,1], index: 8, kind: output, shape index: {1}]
  %9 = xla_tuple %s7, %s8
  %s10 = sld [smem:[#allocation0]]
  $region46: #{tpu_custom_call.1} parent=0
    _
  %s12 = ssub.s32 1, %s10
  %s13 = scalar_select 0, %s12, %s10
  $region1: #{tpu_custom_call.1} parent=0
    #allocation2 [shape = 'u8[512]{0}', space=smem, size = 0x200, scoped, tag = 'output window, operand 0, single buffered']
    #allocation3 [shape = 's32[1]{0}', space=sflag, size = 0x4, scoped, tag = 'scoped memory for tpu_custom_call.1']
    #allocation4 [shape = 'u8[512]{0}', space=smem, size = 0x200, scoped, tag = 'output window, operand 1, single buffered']
    #allocation5 [shape = 's32[1]{0}', space=sflag, size = 0x4, scoped, tag = 'scoped memory for tpu_custom_call.1']
    %14 = vsyncpa [#allocation3], 0
    %15 = vsyncpa [#allocation5], 0
    // Predicated region
    $region2: #{tpu_custom_call.1} parent=1 // pred_check
      _
    $region3: #{tpu_custom_call.1} parent=1 // pred_check_branch
      %17 = sbr.rel (0) target = $region5
    $region4: #{tpu_custom_call.1} parent=1 // pred_region
      _
    $region5: #{tpu_custom_call.1} parent=1 // pred_fallthru
      _
    // Predicated region
    $region6: #{tpu_custom_call.1} parent=1 // pred_check
      _
    $region7: #{tpu_custom_call.1} parent=1 // pred_check_branch
      %19 = sbr.rel (0) target = $region9
    $region8: #{tpu_custom_call.1} parent=1 // pred_region
      _
    $region9: #{tpu_custom_call.1} parent=1 // pred_fallthru
      _
    // Predicated region
    $region10: #{tpu_custom_call.1} parent=1 // pred_check
      _
    $region11: #{tpu_custom_call.1} parent=1 // pred_check_branch
      %21 = sbr.rel (0) target = $region13
    $region12: #{tpu_custom_call.1} parent=1 // pred_region
      _
    $region13: #{tpu_custom_call.1} parent=1 // pred_fallthru
      _
    // Predicated region
    $region14: #{tpu_custom_call.1} parent=1 // pred_check
      _
    $region15: #{tpu_custom_call.1} parent=1 // pred_check_branch
      %23 = sbr.rel (0) target = $region17
    $region16: #{tpu_custom_call.1} parent=1 // pred_region
      _
    $region17: #{tpu_custom_call.1} parent=1 // pred_fallthru
      _
    // Predicated region
    $region18: #{tpu_custom_call.1} parent=1 // pred_check
      _
    $region19: #{tpu_custom_call.1} parent=1 // pred_check_branch
      %25 = sbr.rel (0) target = $region21
    $region20: #{tpu_custom_call.1} parent=1 // pred_region
      _
    $region21: #{tpu_custom_call.1} parent=1 // pred_fallthru
      _
    // Predicated region
    $region22: #{tpu_custom_call.1} parent=1 // pred_check
      _
    $region23: #{tpu_custom_call.1} parent=1 // pred_check_branch
      %27 = sbr.rel (0) target = $region25
    $region24: #{tpu_custom_call.1} parent=1 // pred_region
      _
    $region25: #{tpu_custom_call.1} parent=1 // pred_fallthru
      _
    // Predicated region
    $region26: #{tpu_custom_call.1} parent=1 // pred_check
      _
    $region27: #{tpu_custom_call.1} parent=1 // pred_check_branch
      %29 = sbr.rel (0) target = $region29
    $region28: #{tpu_custom_call.1} parent=1 // pred_region
      _
    $region29: #{tpu_custom_call.1} parent=1 // pred_fallthru
      _
    %v31 = vld [vmem:[%s0] sm:$0xff]
    %v32 = vld [vmem:[%s0 + $0x8] sm:$0xff]
    %v33 = vld [vmem:[%s2] sm:$0xf]
    %v34 = vld [vmem:[%s2 + $0x4] sm:$0xf]
    %v35 = vld [vmem:[%s2 + $0x8] sm:$0xf]
    %v36 = vld [vmem:[%s2 + $0xc] sm:$0xf]
    %v37 = vld [vmem:[%s2 + $0x10] sm:$0xf]
    %v38 = vld [vmem:[%s2 + $0x14] sm:$0xf]
    %v39 = vld [vmem:[%s2 + $0x18] sm:$0xf]
    %v40 = vld [vmem:[%s2 + $0x1c] sm:$0xf]
    %v41 = vld [vmem:[%s2 + $0x20] sm:$0xf]
    %v42 = vld [vmem:[%s2 + $0x24] sm:$0xf]
    %v43 = vld [vmem:[%s2 + $0x28] sm:$0xf]
    %v44 = vld [vmem:[%s2 + $0x2c] sm:$0xf]
    %v45 = vld [vmem:[%s2 + $0x30] sm:$0xf]
    %v46 = vld [vmem:[%s2 + $0x34] sm:$0xf]
    %v47 = vld [vmem:[%s2 + $0x38] sm:$0xf]
    %v48 = vld [vmem:[%s2 + $0x3c] sm:$0xf]
    %v49 = vld [vmem:[%s2 + $0x40] sm:$0xf]
    %v50 = vld [vmem:[%s2 + $0x44] sm:$0xf]
    %v51 = vld [vmem:[%s2 + $0x48] sm:$0xf]
    %v52 = vld [vmem:[%s2 + $0x4c] sm:$0xf]
    %v53 = vld [vmem:[%s2 + $0x50] sm:$0xf]
    %v54 = vld [vmem:[%s2 + $0x54] sm:$0xf]
    %v55 = vld [vmem:[%s2 + $0x58] sm:$0xf]
    %v56 = vld [vmem:[%s2 + $0x5c] sm:$0xf]
    %v57 = vld [vmem:[%s3] sm:$0xff]
    %v58 = vld [vmem:[%s3 + $0x8] sm:$0xff]
    %v59 = vld [vmem:[%s3 + $0x10] sm:$0xff]
    %v60 = vld [vmem:[%s3 + $0x18] sm:$0xff]
    %v61 = vld [vmem:[%s3 + $0x20] sm:$0xff]
    %v62 = vld [vmem:[%s3 + $0x28] sm:$0xff]
    %v63 = vld [vmem:[%s3 + $0x30] sm:$0xff]
    %v64 = vld [vmem:[%s3 + $0x38] sm:$0xff]
    %v65 = vld [vmem:[%s3 + $0x40] sm:$0xff]
    %v66 = vld [vmem:[%s3 + $0x48] sm:$0xff]
    %v67 = vld [vmem:[%s3 + $0x50] sm:$0xff]
    %v68 = vld [vmem:[%s3 + $0x58] sm:$0xff]
    %v69 = vld [vmem:[%s3 + $0x60] sm:$0xff]
    %v70 = vld [vmem:[%s3 + $0x68] sm:$0xff]
    %v71 = vld [vmem:[%s3 + $0x70] sm:$0xff]
    %v72 = vld [vmem:[%s3 + $0x78] sm:$0xff]
    %v73 = vld [vmem:[%s4] sm:$0x1]
    %v74 = vld [vmem:[%s5] sm:$0xff]
    %v75 = vld [vmem:[%s5 + $0x8] sm:$0xff]
    %v76 = vld [vmem:[%s5 + $0x10] sm:$0xff]
    %v77 = vld [vmem:[%s5 + $0x18] sm:$0xff]
    %v78 = vld [vmem:[%s5 + $0x20] sm:$0xff]
    %v79 = vld [vmem:[%s5 + $0x28] sm:$0xff]
    %v80 = vld [vmem:[%s5 + $0x30] sm:$0xff]
    %v81 = vld [vmem:[%s5 + $0x38] sm:$0xff]
    %v82 = vld [vmem:[%s5 + $0x40] sm:$0xff]
    %v83 = vld [vmem:[%s5 + $0x48] sm:$0xff]
    %v84 = vld [vmem:[%s5 + $0x50] sm:$0xff]
    %v85 = vld [vmem:[%s5 + $0x58] sm:$0xff]
    %v86 = vld [vmem:[%s5 + $0x60] sm:$0xff]
    %v87 = vld [vmem:[%s5 + $0x68] sm:$0xff]
    %v88 = vld [vmem:[%s5 + $0x70] sm:$0xff]
    %v89 = vld [vmem:[%s5 + $0x78] sm:$0xff]
    %v90 = vld [vmem:[%s5 + $0x80] sm:$0xff]
    %v91 = vld [vmem:[%s5 + $0x88] sm:$0xff]
    %v92 = vld [vmem:[%s5 + $0x90] sm:$0xff]
    %v93 = vld [vmem:[%s5 + $0x98] sm:$0xff]
    %v94 = vld [vmem:[%s5 + $0xa0] sm:$0xff]
    %v95 = vld [vmem:[%s5 + $0xa8] sm:$0xff]
    %v96 = vld [vmem:[%s5 + $0xb0] sm:$0xff]
    %v97 = vld [vmem:[%s5 + $0xb8] sm:$0xff]
    %v98 = vld [vmem:[%s6] sm:$0xff]
    %v99 = vld [vmem:[%s6 + $0x8] sm:$0xff]
    %v100 = vld [vmem:[%s6 + $0x10] sm:$0xff]
    %v101 = vld [vmem:[%s6 + $0x18] sm:$0xff]
    %v102 = vld [vmem:[%s6 + $0x20] sm:$0xff]
    %v103 = vld [vmem:[%s6 + $0x28] sm:$0xff]
    %v104 = vld [vmem:[%s6 + $0x30] sm:$0xff]
    %v105 = vld [vmem:[%s6 + $0x38] sm:$0xff]
    %v106 = vld [vmem:[%s6 + $0x40] sm:$0xff]
    %v107 = vld [vmem:[%s6 + $0x48] sm:$0xff]
    %v108 = vld [vmem:[%s6 + $0x50] sm:$0xff]
    %v109 = vld [vmem:[%s6 + $0x58] sm:$0xff]
    %v110 = vld [vmem:[%s6 + $0x60] sm:$0xff]
    %v111 = vld [vmem:[%s6 + $0x68] sm:$0xff]
    %v112 = vld [vmem:[%s6 + $0x70] sm:$0xff]
    %v113 = vld [vmem:[%s6 + $0x78] sm:$0xff]
    %v114 = vld [vmem:[%s6 + $0x80] sm:$0xff]
    %v115 = vld [vmem:[%s6 + $0x88] sm:$0xff]
    %v116 = vld [vmem:[%s6 + $0x90] sm:$0xff]
    %v117 = vld [vmem:[%s6 + $0x98] sm:$0xff]
    %v118 = vld [vmem:[%s6 + $0xa0] sm:$0xff]
    %v119 = vld [vmem:[%s6 + $0xa8] sm:$0xff]
    %v120 = vld [vmem:[%s6 + $0xb0] sm:$0xff]
    %v121 = vld [vmem:[%s6 + $0xb8] sm:$0xff]
    %v122 = vld [vmem:[%s6 + $0xc0] sm:$0xff]
    %v123 = vld [vmem:[%s6 + $0xc8] sm:$0xff]
    %v124 = vld [vmem:[%s6 + $0xd0] sm:$0xff]
    %v125 = vld [vmem:[%s6 + $0xd8] sm:$0xff]
    %v126 = vld [vmem:[%s6 + $0xe0] sm:$0xff]
    %v127 = vld [vmem:[%s6 + $0xe8] sm:$0xff]
    %v128 = vld [vmem:[%s6 + $0xf0] sm:$0xff]
    %v129 = vld [vmem:[%s6 + $0xf8] sm:$0xff]
    %s130 = smul.u32 0, 8
    %v131 = vlaneseq
    %v132 = vshrl.u32 %v131, 7
    %v133 = vstv %s130
    %v134 = vadd.s32 %v133, %v132
    %vm135 = vcmp.lt.s32.totalorder %v134, 2
    %v136 = vsel %vm135, 1, 0
    %v137 = vcvt.s32.f32 %v136
    %v138 = vpack.c.bf16 %v31, %v31
    %v139 = vpack.c.bf16 %v32, %v32
    %v141 = vperm.slane %v73, 0
    %v167 = vunpack.c.l.b16 %v33
    %v168 = vunpack.c.l.b16 %v34
    %v169 = vunpack.c.l.b16 %v35
    %v170 = vunpack.c.l.b16 %v36
    %v171 = vunpack.c.l.b16 %v37
    %v172 = vunpack.c.l.b16 %v38
    %v173 = vunpack.c.l.b16 %v39
    %v174 = vunpack.c.l.b16 %v40
    %v175 = vunpack.c.l.b16 %v41
    %v176 = vunpack.c.l.b16 %v42
    %v177 = vunpack.c.l.b16 %v43
    %v178 = vunpack.c.l.b16 %v44
    %v179 = vunpack.c.l.b16 %v45
    %v180 = vunpack.c.l.b16 %v46
    %v181 = vunpack.c.l.b16 %v47
    %v182 = vunpack.c.l.b16 %v48
    %v183 = vunpack.c.l.b16 %v49
    %v184 = vunpack.c.l.b16 %v50
    %v185 = vunpack.c.l.b16 %v51
    %v186 = vunpack.c.l.b16 %v52
    %v187 = vunpack.c.l.b16 %v53
    %v188 = vunpack.c.l.b16 %v54
    %v189 = vunpack.c.l.b16 %v55
    %v190 = vunpack.c.l.b16 %v56
    %v191 = vpack.c.b16 %v168, %v167
    %v192 = vpack.c.b16 %v170, %v169
    %v193 = vpack.c.b16 %v172, %v171
    %v194 = vpack.c.b16 %v174, %v173
    %v195 = vpack.c.b16 %v176, %v175
    %v196 = vpack.c.b16 %v178, %v177
    %v197 = vpack.c.b16 %v180, %v179
    %v198 = vpack.c.b16 %v182, %v181
    %v199 = vpack.c.b16 %v184, %v183
    %v200 = vpack.c.b16 %v186, %v185
    %v201 = vpack.c.b16 %v188, %v187
    %v202 = vpack.c.b16 %v190, %v189
    %vm215 = vcmask 523264
    %v217 = vsel %vm215, %v139, 0
    %219 = vmatpush.bf16.msra.mxu0 %v198
    %220 = vmatpush.bf16.msra.mxu0 %v197
    %221 = vmatpush.bf16.msra.mxu0 %v196
    %222 = vmatpush.bf16.msra.mxu0 %v195
    %223 = vmatpush.bf16.msra.mxu0 %v194
    %224 = vmatpush.bf16.msra.mxu0 %v193
    %225 = vmatpush.bf16.msra.mxu0 %v192
    %226 = vmatpush.bf16.msra.mxu0 %v191
    %227 = vmatmul.bf16.gmra.mxu0 %v138
    %v228 = vpop.f32.mrf.mxu0
    %v229 = vadd.f32 %v141, %v228
    %v230 = vpop.f32.mrf.mxu0
    %231 = vdwg.mxu0
    %232 = vmatpush.bf16.msra.mxu0 0
    %233 = vmatpush.bf16.msra.mxu0 0
    %234 = vmatpush.bf16.msra.mxu0 0
    %235 = vmatpush.bf16.msra.mxu0 0
    %236 = vmatpush.bf16.msra.mxu0 %v202
    %237 = vmatpush.bf16.msra.mxu0 %v201
    %238 = vmatpush.bf16.msra.mxu0 %v200
    %239 = vmatpush.bf16.msra.mxu0 %v199
    %240 = vmatmul.bf16.gmra.mxu0 %v217
    %v241 = vpop.f32.mrf.mxu0
    %v242 = vadd.f32 %v229, %v241
    %v243 = vpop.f32.mrf.mxu0
    %244 = vdwg.mxu0
    %245 = vmax.xlane.f32.xlu0 %v242
    %v246 = vpop.xlane.xlu0 %245
    %v247 = vsub.f32 %v242, %v246
    %v248 = vmul.f32 %v247, 1.442695
    %v249 = vpow.pop %v248
    %250 = vadd.xlane.f32.xlu0 %v249
    %v251 = vpop.xlane.xlu0 %250
    %v252 = vrcp.pop %v251
    %v253 = vmul.f32 %v249, %v252
    %vm254 = vcmp.gt.f32.partialorder %v253, 0.0
    %v255 = vlog2.pop %v253
    %v256 = vmul.f32 %v255, 0.6931472
    %v257 = vsel %vm254, %v256, 0.0
    %v258 = vmul.f32 %v253, %v257
    %259 = vadd.xlane.f32.xlu0 %v258
    %v260 = vpop.xlane.xlu0 %259
    %v261 = vsub.f32 0.0, %v260
    %v262 = vmul.f32 %v261, %v137
    %vm263 = vcmask 7168
    %v264 = vsel %vm263, %v262, 0.0
    %265 = vadd.xlane.f32.xlu0 %v264
    %v266 = vpop.xlane.xlu0 %265
    %v267 = vrot.slane %v266, 4
    %v268 = vadd.f32 %v266, %v267
    %v269 = vrot.slane %v268, 2
    %v270 = vadd.f32 %v268, %v269
    %v271 = vrot.slane %v270, 1
    %v272 = vadd.f32 %v270, %v271
    %s273 = vtos %v272
    %s274 = scalar_lea.smem [#allocation4], 0
    %275 = sst [smem:[%s274]] %s273
    %v276 = vld [vmem:[%s1] sm:$0xff]
    %v277 = vld [vmem:[%s1 + $0x8] sm:$0xff]
    %v278 = vmul.f32 %v276, %v276
    %v279 = vmul.f32 %v277, %v277
    %v281 = vsel %vm215, %v279, 0
    %283 = vmatpush.msra.mxu0 %v89
    %284 = vmatpush.msra.mxu0 %v88
    %285 = vmatpush.msra.mxu0 %v87
    %286 = vmatpush.msra.mxu0 %v86
    %287 = vmatpush.msra.mxu0 %v85
    %288 = vmatpush.msra.mxu0 %v84
    %289 = vmatpush.msra.mxu0 %v83
    %290 = vmatpush.msra.mxu0 %v82
    %291 = vmatpush.msra.mxu0 %v81
    %292 = vmatpush.msra.mxu0 %v80
    %293 = vmatpush.msra.mxu0 %v79
    %294 = vmatpush.msra.mxu0 %v78
    %295 = vmatpush.msra.mxu0 %v77
    %296 = vmatpush.msra.mxu0 %v76
    %297 = vmatpush.msra.mxu0 %v75
    %298 = vmatpush.msra.mxu0 %v74
    %299 = vmatmul.f32.gmra.mxu0 %v278
    %v300 = vpop.f32.mrf.mxu0
    %v301 = vadd.f32 0.0, %v300
    %302 = vdwg.mxu0
    %303 = vmatpush.msra.mxu0 0.0
    %304 = vmatpush.msra.mxu0 0.0
    %305 = vmatpush.msra.mxu0 0.0
    %306 = vmatpush.msra.mxu0 0.0
    %307 = vmatpush.msra.mxu0 0.0
    %308 = vmatpush.msra.mxu0 0.0
    %309 = vmatpush.msra.mxu0 0.0
    %310 = vmatpush.msra.mxu0 0.0
    %311 = vmatpush.msra.mxu0 %v97
    %312 = vmatpush.msra.mxu0 %v96
    %313 = vmatpush.msra.mxu0 %v95
    %314 = vmatpush.msra.mxu0 %v94
    %315 = vmatpush.msra.mxu0 %v93
    %316 = vmatpush.msra.mxu0 %v92
    %317 = vmatpush.msra.mxu0 %v91
    %318 = vmatpush.msra.mxu0 %v90
    %319 = vmatmul.f32.gmra.mxu0 %v281
    %v320 = vpop.f32.mrf.mxu0
    %v321 = vadd.f32 %v301, %v320
    %322 = vdwg.mxu0
    %v323 = vrsqrt.pop %v321
    %v324 = vmul.f32 %v323, %v321
    %v325 = vmul.f32 %v324, %v323
    %v326 = vmul.f32 0.5, %v325
    %v327 = vsub.f32 1.5, %v326
    %v328 = vmul.f32 %v323, %v327
    %v329 = vmul.f32 %v321, %v328
    %vm330 = vcmp.eq.f32.partialorder %v321, inf
    %v331 = vsel %vm330, %v321, %v329
    %vm332 = vcmp.eq.f32.partialorder %v321, 0.0
    %v333 = vand.u32 %v321, 2147483648
    %v334 = vsel %vm332, %v333, %v331
    %335 = vmatpush.msra.mxu0 %v128
    %336 = vmatpush.msra.mxu0 %v126
    %337 = vmatpush.msra.mxu0 %v124
    %338 = vmatpush.msra.mxu0 %v122
    %339 = vmatpush.msra.mxu0 %v120
    %340 = vmatpush.msra.mxu0 %v118
    %341 = vmatpush.msra.mxu0 %v116
    %342 = vmatpush.msra.mxu0 %v114
    %343 = vmatpush.msra.mxu0 %v112
    %344 = vmatpush.msra.mxu0 %v110
    %345 = vmatpush.msra.mxu0 %v108
    %346 = vmatpush.msra.mxu0 %v106
    %347 = vmatpush.msra.mxu0 %v104
    %348 = vmatpush.msra.mxu0 %v102
    %349 = vmatpush.msra.mxu0 %v100
    %350 = vmatpush.msra.mxu0 %v98
    %351 = vmatmul.f32.gmra.mxu0 %v334
    %v352 = vpop.f32.mrf.mxu0
    %v353 = vadd.f32 1e-08, %v352
    %354 = vdwg.mxu0
    %355 = vmatpush.msra.mxu0 %v129
    %356 = vmatpush.msra.mxu0 %v127
    %357 = vmatpush.msra.mxu0 %v125
    %358 = vmatpush.msra.mxu0 %v123
    %359 = vmatpush.msra.mxu0 %v121
    %360 = vmatpush.msra.mxu0 %v119
    %361 = vmatpush.msra.mxu0 %v117
    %362 = vmatpush.msra.mxu0 %v115
    %363 = vmatpush.msra.mxu0 %v113
    %364 = vmatpush.msra.mxu0 %v111
    %365 = vmatpush.msra.mxu0 %v109
    %366 = vmatpush.msra.mxu0 %v107
    %367 = vmatpush.msra.mxu0 %v105
    %368 = vmatpush.msra.mxu0 %v103
    %369 = vmatpush.msra.mxu0 %v101
    %370 = vmatpush.msra.mxu0 %v99
    %371 = vmatmul.f32.gmra.mxu0 %v334
    %v372 = vpop.f32.mrf.mxu0
    %v373 = vadd.f32 1e-08, %v372
    %374 = vdwg.mxu0
    %v375 = vrcp.pop %v353
    %v376 = vrcp.pop %v373
    %v377 = vmul.f32 %v276, %v375
    %v378 = vmul.f32 %v277, %v376
    %v379 = vmul.f32 %v377, 0.01
    %v380 = vmul.f32 %v378, 0.01
    %v381 = vadd.f32 %v31, %v379
    %v382 = vadd.f32 %v32, %v380
    %v383 = vpack.c.bf16 %v381, %v381
    %v384 = vpack.c.bf16 %v382, %v382
    %v386 = vsel %vm215, %v384, 0
    %388 = vmatpush.bf16.msra.mxu0 %v198
    %389 = vmatpush.bf16.msra.mxu0 %v197
    %390 = vmatpush.bf16.msra.mxu0 %v196
    %391 = vmatpush.bf16.msra.mxu0 %v195
    %392 = vmatpush.bf16.msra.mxu0 %v194
    %393 = vmatpush.bf16.msra.mxu0 %v193
    %394 = vmatpush.bf16.msra.mxu0 %v192
    %395 = vmatpush.bf16.msra.mxu0 %v191
    %396 = vmatmul.bf16.gmra.mxu0 %v383
    %v397 = vpop.f32.mrf.mxu0
    %v398 = vadd.f32 %v141, %v397
    %v399 = vpop.f32.mrf.mxu0
    %400 = vdwg.mxu0
    %401 = vmatpush.bf16.msra.mxu0 0
    %402 = vmatpush.bf16.msra.mxu0 0
    %403 = vmatpush.bf16.msra.mxu0 0
    %404 = vmatpush.bf16.msra.mxu0 0
    %405 = vmatpush.bf16.msra.mxu0 %v202
    %406 = vmatpush.bf16.msra.mxu0 %v201
    %407 = vmatpush.bf16.msra.mxu0 %v200
    %408 = vmatpush.bf16.msra.mxu0 %v199
    %409 = vmatmul.bf16.gmra.mxu0 %v386
    %v410 = vpop.f32.mrf.mxu0
    %v411 = vadd.f32 %v398, %v410
    %v412 = vpop.f32.mrf.mxu0
    %413 = vdwg.mxu0
    %414 = vmax.xlane.f32.xlu0 %v411
    %v415 = vpop.xlane.xlu0 %414
    %v416 = vsub.f32 %v411, %v415
    %v417 = vmul.f32 %v416, 1.442695
    %v418 = vpow.pop %v417
    %419 = vadd.xlane.f32.xlu0 %v418
    %v420 = vpop.xlane.xlu0 %419
    %v421 = vrcp.pop %v420
    %v422 = vmul.f32 %v418, %v421
    %v423 = vsub.f32 %v422, %v253
    %v424 = vmul.f32 %v423, 0.005
    %v425 = vpack.c.bf16 %v424, %v424
    %v442 = vunpack.c.l.b16 %v57
    %v443 = vunpack.c.h.b16 %v57
    %v444 = vunpack.c.l.b16 %v58
    %v445 = vunpack.c.h.b16 %v58
    %v446 = vunpack.c.l.b16 %v59
    %v447 = vunpack.c.h.b16 %v59
    %v448 = vunpack.c.l.b16 %v60
    %v449 = vunpack.c.h.b16 %v60
    %v450 = vunpack.c.l.b16 %v61
    %v451 = vunpack.c.h.b16 %v61
    %v452 = vunpack.c.l.b16 %v62
    %v453 = vunpack.c.h.b16 %v62
    %v454 = vunpack.c.l.b16 %v63
    %v455 = vunpack.c.h.b16 %v63
    %v456 = vunpack.c.l.b16 %v64
    %v457 = vunpack.c.h.b16 %v64
    %v458 = vunpack.c.l.b16 %v65
    %v459 = vunpack.c.h.b16 %v65
    %v460 = vunpack.c.l.b16 %v66
    %v461 = vunpack.c.h.b16 %v66
    %v462 = vunpack.c.l.b16 %v67
    %v463 = vunpack.c.h.b16 %v67
    %v464 = vunpack.c.l.b16 %v68
    %v465 = vunpack.c.h.b16 %v68
    %v466 = vunpack.c.l.b16 %v69
    %v467 = vunpack.c.h.b16 %v69
    %v468 = vunpack.c.l.b16 %v70
    %v469 = vunpack.c.h.b16 %v70
    %v470 = vunpack.c.l.b16 %v71
    %v471 = vunpack.c.h.b16 %v71
    %v472 = vunpack.c.l.b16 %v72
    %v473 = vunpack.c.h.b16 %v72
    %v474 = vpack.c.b16 %v444, %v442
    %v475 = vpack.c.b16 %v445, %v443
    %v476 = vpack.c.b16 %v448, %v446
    %v477 = vpack.c.b16 %v449, %v447
    %v478 = vpack.c.b16 %v452, %v450
    %v479 = vpack.c.b16 %v453, %v451
    %v480 = vpack.c.b16 %v456, %v454
    %v481 = vpack.c.b16 %v457, %v455
    %v482 = vpack.c.b16 %v460, %v458
    %v483 = vpack.c.b16 %v461, %v459
    %v484 = vpack.c.b16 %v464, %v462
    %v485 = vpack.c.b16 %v465, %v463
    %v486 = vpack.c.b16 %v468, %v466
    %v487 = vpack.c.b16 %v469, %v467
    %v488 = vpack.c.b16 %v472, %v470
    %v489 = vpack.c.b16 %v473, %v471
    %506 = vmatpush.bf16.msra.mxu0 %v488
    %507 = vmatpush.bf16.msra.mxu0 %v486
    %508 = vmatpush.bf16.msra.mxu0 %v484
    %509 = vmatpush.bf16.msra.mxu0 %v482
    %510 = vmatpush.bf16.msra.mxu0 %v480
    %511 = vmatpush.bf16.msra.mxu0 %v478
    %512 = vmatpush.bf16.msra.mxu0 %v476
    %513 = vmatpush.bf16.msra.mxu0 %v474
    %514 = vmatmul.bf16.gmra.mxu0 %v425
    %v515 = vpop.f32.mrf.mxu0
    %v516 = vadd.f32 0.0, %v515
    %v517 = vpop.f32.mrf.mxu0
    %518 = vdwg.mxu0
    %519 = vmatpush.bf16.msra.mxu0 %v489
    %520 = vmatpush.bf16.msra.mxu0 %v487
    %521 = vmatpush.bf16.msra.mxu0 %v485
    %522 = vmatpush.bf16.msra.mxu0 %v483
    %523 = vmatpush.bf16.msra.mxu0 %v481
    %524 = vmatpush.bf16.msra.mxu0 %v479
    %525 = vmatpush.bf16.msra.mxu0 %v477
    %526 = vmatpush.bf16.msra.mxu0 %v475
    %527 = vmatmul.bf16.gmra.mxu0 %v425
    %v528 = vpop.f32.mrf.mxu0
    %v529 = vadd.f32 0.0, %v528
    %v530 = vpop.f32.mrf.mxu0
    %531 = vdwg.mxu0
    %v532 = vmul.f32 %v516, %v516
    %v533 = vmul.f32 %v529, %v529
    %v535 = vsel %vm215, %v533, 0
    %537 = vmatpush.msra.mxu0 %v89
    %538 = vmatpush.msra.mxu0 %v88
    %539 = vmatpush.msra.mxu0 %v87
    %540 = vmatpush.msra.mxu0 %v86
    %541 = vmatpush.msra.mxu0 %v85
    %542 = vmatpush.msra.mxu0 %v84
    %543 = vmatpush.msra.mxu0 %v83
    %544 = vmatpush.msra.mxu0 %v82
    %545 = vmatpush.msra.mxu0 %v81
    %546 = vmatpush.msra.mxu0 %v80
    %547 = vmatpush.msra.mxu0 %v79
    %548 = vmatpush.msra.mxu0 %v78
    %549 = vmatpush.msra.mxu0 %v77
    %550 = vmatpush.msra.mxu0 %v76
    %551 = vmatpush.msra.mxu0 %v75
    %552 = vmatpush.msra.mxu0 %v74
    %553 = vmatmul.f32.gmra.mxu0 %v532
    %v554 = vpop.f32.mrf.mxu0
    %v555 = vadd.f32 0.0, %v554
    %556 = vdwg.mxu0
    %557 = vmatpush.msra.mxu0 0.0
    %558 = vmatpush.msra.mxu0 0.0
    %559 = vmatpush.msra.mxu0 0.0
    %560 = vmatpush.msra.mxu0 0.0
    %561 = vmatpush.msra.mxu0 0.0
    %562 = vmatpush.msra.mxu0 0.0
    %563 = vmatpush.msra.mxu0 0.0
    %564 = vmatpush.msra.mxu0 0.0
    %565 = vmatpush.msra.mxu0 %v97
    %566 = vmatpush.msra.mxu0 %v96
    %567 = vmatpush.msra.mxu0 %v95
    %568 = vmatpush.msra.mxu0 %v94
    %569 = vmatpush.msra.mxu0 %v93
    %570 = vmatpush.msra.mxu0 %v92
    %571 = vmatpush.msra.mxu0 %v91
    %572 = vmatpush.msra.mxu0 %v90
    %573 = vmatmul.f32.gmra.mxu0 %v535
    %v574 = vpop.f32.mrf.mxu0
    %v575 = vadd.f32 %v555, %v574
    %576 = vdwg.mxu0
    %v577 = vrsqrt.pop %v575
    %v578 = vmul.f32 %v577, %v575
    %v579 = vmul.f32 %v578, %v577
    %v580 = vmul.f32 0.5, %v579
    %v581 = vsub.f32 1.5, %v580
    %v582 = vmul.f32 %v577, %v581
    %v583 = vmul.f32 %v575, %v582
    %vm584 = vcmp.eq.f32.partialorder %v575, inf
    %v585 = vsel %vm584, %v575, %v583
    %vm586 = vcmp.eq.f32.partialorder %v575, 0.0
    %v587 = vand.u32 %v575, 2147483648
    %v588 = vsel %vm586, %v587, %v585
    %589 = vmatpush.msra.mxu0 %v128
    %590 = vmatpush.msra.mxu0 %v126
    %591 = vmatpush.msra.mxu0 %v124
    %592 = vmatpush.msra.mxu0 %v122
    %593 = vmatpush.msra.mxu0 %v120
    %594 = vmatpush.msra.mxu0 %v118
    %595 = vmatpush.msra.mxu0 %v116
    %596 = vmatpush.msra.mxu0 %v114
    %597 = vmatpush.msra.mxu0 %v112
    %598 = vmatpush.msra.mxu0 %v110
    %599 = vmatpush.msra.mxu0 %v108
    %600 = vmatpush.msra.mxu0 %v106
    %601 = vmatpush.msra.mxu0 %v104
    %602 = vmatpush.msra.mxu0 %v102
    %603 = vmatpush.msra.mxu0 %v100
    %604 = vmatpush.msra.mxu0 %v98
    %605 = vmatmul.f32.gmra.mxu0 %v588
    %v606 = vpop.f32.mrf.mxu0
    %v607 = vadd.f32 1e-08, %v606
    %608 = vdwg.mxu0
    %609 = vmatpush.msra.mxu0 %v129
    %610 = vmatpush.msra.mxu0 %v127
    %611 = vmatpush.msra.mxu0 %v125
    %612 = vmatpush.msra.mxu0 %v123
    %613 = vmatpush.msra.mxu0 %v121
    %614 = vmatpush.msra.mxu0 %v119
    %615 = vmatpush.msra.mxu0 %v117
    %616 = vmatpush.msra.mxu0 %v115
    %617 = vmatpush.msra.mxu0 %v113
    %618 = vmatpush.msra.mxu0 %v111
    %619 = vmatpush.msra.mxu0 %v109
    %620 = vmatpush.msra.mxu0 %v107
    %621 = vmatpush.msra.mxu0 %v105
    %622 = vmatpush.msra.mxu0 %v103
    %623 = vmatpush.msra.mxu0 %v101
    %624 = vmatpush.msra.mxu0 %v99
    %625 = vmatmul.f32.gmra.mxu0 %v588
    %v626 = vpop.f32.mrf.mxu0
    %v627 = vadd.f32 1e-08, %v626
    %628 = vdwg.mxu0
    %v629 = vrcp.pop %v607
    %v630 = vrcp.pop %v627
    %v631 = vmul.f32 %v516, %v629
    %v632 = vmul.f32 %v529, %v630
    %v633 = vmul.f32 %v631, 0.1
    %v634 = vmul.f32 %v632, 0.1
    %v635 = vadd.f32 %v31, %v633
    %v636 = vadd.f32 %v32, %v634
    %v637 = vpack.c.bf16 %v635, %v635
    %v638 = vpack.c.bf16 %v636, %v636
    %v640 = vsel %vm215, %v638, 0
    %642 = vmatpush.bf16.msra.mxu0 %v198
    %643 = vmatpush.bf16.msra.mxu0 %v197
    %644 = vmatpush.bf16.msra.mxu0 %v196
    %645 = vmatpush.bf16.msra.mxu0 %v195
    %646 = vmatpush.bf16.msra.mxu0 %v194
    %647 = vmatpush.bf16.msra.mxu0 %v193
    %648 = vmatpush.bf16.msra.mxu0 %v192
    %649 = vmatpush.bf16.msra.mxu0 %v191
    %650 = vmatmul.bf16.gmra.mxu0 %v637
    %v651 = vpop.f32.mrf.mxu0
    %v652 = vadd.f32 %v141, %v651
    %v653 = vpop.f32.mrf.mxu0
    %654 = vdwg.mxu0
    %655 = vmatpush.bf16.msra.mxu0 0
    %656 = vmatpush.bf16.msra.mxu0 0
    %657 = vmatpush.bf16.msra.mxu0 0
    %658 = vmatpush.bf16.msra.mxu0 0
    %659 = vmatpush.bf16.msra.mxu0 %v202
    %660 = vmatpush.bf16.msra.mxu0 %v201
    %661 = vmatpush.bf16.msra.mxu0 %v200
    %662 = vmatpush.bf16.msra.mxu0 %v199
    %663 = vmatmul.bf16.gmra.mxu0 %v640
    %v664 = vpop.f32.mrf.mxu0
    %v665 = vadd.f32 %v652, %v664
    %v666 = vpop.f32.mrf.mxu0
    %667 = vdwg.mxu0
    %668 = vmax.xlane.f32.xlu0 %v665
    %v669 = vpop.xlane.xlu0 %668
    %v670 = vsub.f32 %v665, %v669
    %v671 = vmul.f32 %v670, 1.442695
    %v672 = vpow.pop %v671
    %673 = vadd.xlane.f32.xlu0 %v672
    %v674 = vpop.xlane.xlu0 %673
    %v675 = vlog2.pop %v674
    %v676 = vmul.f32 %v675, 0.6931472
    %v677 = vsub.f32 %v670, %v676
    %v678 = vsub.f32 %v257, %v677
    %v679 = vmul.f32 %v253, %v678
    %680 = vadd.xlane.f32.xlu0 %v679
    %v681 = vpop.xlane.xlu0 %680
    %v682 = vmul.f32 %v681, %v137
    %v683 = vsel %vm263, %v682, 0.0
    %684 = vadd.xlane.f32.xlu0 %v683
    %v685 = vpop.xlane.xlu0 %684
    %v686 = vrot.slane %v685, 4
    %v687 = vadd.f32 %v685, %v686
    %v688 = vrot.slane %v687, 2
    %v689 = vadd.f32 %v687, %v688
    %v690 = vrot.slane %v689, 1
    %v691 = vadd.f32 %v689, %v690
    %s692 = vtos %v691
    %s693 = scalar_lea.smem [#allocation2], 0
    %694 = sst [smem:[%s693]] %s692
    // Predicated region
    $region30: #{tpu_custom_call.1} parent=1 // pred_check
      _
    $region31: #{tpu_custom_call.1} parent=1 // pred_check_branch
      %696 = sbr.rel (0) target = $region33
    $region32: #{tpu_custom_call.1} parent=1 // pred_region
      %698 = vsyncadd [#allocation3], 0
      %s700 = sshll.u32 %s7, 4
      %s701 = int_to_ptr.hbm [resolvable:$true] %s700
      %703 = dma.smem_to_hbm [#allocation2], 16, %s701, [#allocation3]
    $region33: #{tpu_custom_call.1} parent=1 // pred_fallthru
      _
    // Predicated region
    $region34: #{tpu_custom_call.1} parent=1 // pred_check
      _
    $region35: #{tpu_custom_call.1} parent=1 // pred_check_branch
      %705 = sbr.rel (0) target = $region37
    $region36: #{tpu_custom_call.1} parent=1 // pred_region
      %707 = vsyncadd [#allocation5], 0
      %s709 = sshll.u32 %s8, 4
      %s710 = int_to_ptr.hbm [resolvable:$true] %s709
      %712 = dma.smem_to_hbm [#allocation4], 16, %s710, [#allocation5]
    $region37: #{tpu_custom_call.1} parent=1 // pred_fallthru
      _
    // Predicated region
    $region38: #{tpu_custom_call.1} parent=1 // pred_check
      _
    $region39: #{tpu_custom_call.1} parent=1 // pred_check_branch
      %714 = sbr.rel (0) target = $region41
    $region40: #{tpu_custom_call.1} parent=1 // pred_region
      %716 = dma.done [#allocation3], 16
    $region41: #{tpu_custom_call.1} parent=1 // pred_fallthru
      _
    // Predicated region
    $region42: #{tpu_custom_call.1} parent=1 // pred_check
      _
    $region43: #{tpu_custom_call.1} parent=1 // pred_check_branch
      %718 = sbr.rel (0) target = $region45
    $region44: #{tpu_custom_call.1} parent=1 // pred_region
      %720 = dma.done [#allocation5], 16
    $region45: #{tpu_custom_call.1} parent=1 // pred_fallthru
      _
    %721 = sfence
    %722 = vsyncpa [#allocation3], 1
    %723 = vsyncpa [#allocation5], 1

</llo_original>
